<compile_context>
chip_gen: v5e
topology: v5e:2x2
jax: 0.10.0
libtpu: 0.0.40
codegen_flags: <defaults>
</compile_context>

<pallas_src>
import numpy as np

import jax
import jax.numpy as jnp
from jax import lax
from jax.experimental import pallas as pl
from jax.experimental.pallas import tpu as pltpu


def _round_up(n, m):
    return ((n + m - 1) // m) * m


def _sublane(dtype):
    # Minimum second-to-last-dim granularity per dtype packing.
    return {4: 8, 2: 16, 1: 32}[np.dtype(dtype).itemsize]


def _rbf_epilogue(xc2, xsq, csq, isg, o_ref):
    # xc2 = 2 * x.c (f32); d2 = ||x||^2 + ||c||^2 - 2 x.c, clamped for
    # cancellation; gaussian(sqrt(d2)/sigma) = exp(-d2 * exp(-2*log_sigma)).
    d2 = jnp.maximum(xsq + csq - xc2, 0.0)
    z = -(d2 * isg)
    if o_ref.dtype == jnp.bfloat16:
        # bf16 exp + bf16 store: doubles EUP rate (v6e/v7x) and halves the
        # dominant HBM write stream.
        o_ref[...] = jnp.exp(z.astype(jnp.bfloat16))
    else:
        o_ref[...] = jnp.exp(z).astype(o_ref.dtype)


def _rbf_kernel_single(x_ref, c2_ref, xsq_ref, cs_ref, o_ref):
    # x_ref:  (TM, TK) bf16     c2_ref: (TN, TK) bf16  (= 2*centres)
    # xsq_ref:(TM, 1)  f32      cs_ref: (2, TN)  f32   (row0=||c||^2, row1=isg)
    xc2 = lax.dot_general(
        x_ref[...], c2_ref[...],
        dimension_numbers=(((1,), (1,)), ((), ())),
        preferred_element_type=jnp.float32,
    )
    _rbf_epilogue(xc2, xsq_ref[...], cs_ref[0:1, :], cs_ref[1:2, :], o_ref)


def _rbf_kernel_ksplit(x_ref, c2_ref, xsq_ref, cs_ref, o_ref, acc_ref):
    k = pl.program_id(2)

    @pl.when(k == 0)
    def _():
        acc_ref[...] = jnp.zeros_like(acc_ref)

    acc_ref[...] += lax.dot_general(
        x_ref[...], c2_ref[...],
        dimension_numbers=(((1,), (1,)), ((), ())),
        preferred_element_type=jnp.float32,
    )

    @pl.when(k == pl.num_programs(2) - 1)
    def _():
        _rbf_epilogue(acc_ref[...], xsq_ref[...],
                      cs_ref[0:1, :], cs_ref[1:2, :], o_ref)


def rbf_forward(x, centres, log_sigmas, *, out_dtype=jnp.float32,
                mxu_dtype=jnp.bfloat16, k_split_threshold=None):
    """x: (B, F_in), centres: (F_out, F_in), log_sigmas: (F_out,)."""
    x = jnp.asarray(x, jnp.float32)
    centres = jnp.asarray(centres, jnp.float32)
    log_sigmas = jnp.asarray(log_sigmas, jnp.float32)

    B, f_in = x.shape
    f_out = centres.shape[0]

    # ---- hoisted per-row / per-centre quantities (f32) ----------------------
    xsq = jnp.sum(x * x, axis=-1, keepdims=True)          # (B, 1)
    csq = jnp.sum(centres * centres, axis=-1)             # (F_out,)
    isg = jnp.exp(-2.0 * log_sigmas)                      # (F_out,)
    cs = jnp.stack([csq, isg], axis=0)                    # (2, F_out), one DMA

    # ---- MXU operands: bf16, centres pre-scaled by 2 (exact, power of two) --
    x_mx = x.astype(mxu_dtype)
    c2_mx = (centres * 2.0).astype(mxu_dtype)

    # ---- tile sizes (only dtype-granularity rounding, no tile-multiple pad) -
    g_m = max(_sublane(mxu_dtype), _sublane(out_dtype))
    tm = min(256, _round_up(B, g_m))
    tn = min(512, _round_up(f_out, 128))
    n_i = pl.cdiv(B, tm)
    n_j = pl.cdiv(f_out, tn)
    # Guarantee >=2 tiles along a parallel axis when possible (v7x: 2 TCs).
    while n_i * n_j < 2:
        if tm > g_m:
            tm = max(g_m, _round_up(tm // 2, g_m))
            n_i = pl.cdiv(B, tm)
        elif tn > 128:
            tn = max(128, _round_up(tn // 2, 128))
            n_j = pl.cdiv(f_out, tn)
        else:
            break

    # ---- F_in split: bounds per-tile VMEM independently of f_in -------------
    if k_split_threshold is None:
        try:
            vmem_cap = pltpu.get_tpu_info().vmem_capacity_bytes
        except Exception:
            vmem_cap = 64 << 20
        # Halve the slab size on low-VMEM chips (v7x: 64 MiB physical).
        k_split_threshold = 512 if vmem_cap <= (64 << 20) else 1024

    if f_in > k_split_threshold:
        n_k = pl.cdiv(f_in, k_split_threshold)
        tk = _round_up(pl.cdiv(f_in, n_k), 128)
        f_in_pad = n_k * tk
        # Zero-pad only the contraction axis (zeros add nothing to the dot).
        x_mx = jnp.pad(x_mx, ((0, 0), (0, f_in_pad - f_in)))
        c2_mx = jnp.pad(c2_mx, ((0, 0), (0, f_in_pad - f_in)))
    else:
        n_k = 1
        tk = f_in   # full contraction dim resident in the tile

    # ---- VMEM budget & cost hint --------------------------------------------
    in_bytes = np.dtype(mxu_dtype).itemsize
    out_bytes = np.dtype(out_dtype).itemsize
    working_set = (2 * (tm + tn) * tk * in_bytes          # double-buffered x, c
                   + 2 * tm * tn * out_bytes              # double-buffered out
                   + tm * tn * 4                          # accumulator scratch
                   + 2 * (tm * 4 + 2 * tn * 4))           # xsq / cs vectors
    vmem_limit = int(min(max(16 << 20, 2 * working_set + (4 << 20)), 40 << 20))

    cost = pl.CostEstimate(
        flops=2 * B * f_out * f_in + 4 * B * f_out,
        transcendentals=B * f_out,
        bytes_accessed=int(
            in_bytes * (B * f_in * n_j                       # x re-read per F_out tile
                        + f_out * f_in * (n_i if n_k > 1 else 1))
            + out_bytes * B * f_out
            + 4 * (B + 2 * f_out)),
    )

    # ---- grid / specs --------------------------------------------------------
    if n_k == 1:
        # Inner axis sweeps batch tiles: centre tile (+ cs) stays resident.
        grid = (n_j, n_i)
        in_specs = [
            pl.BlockSpec((tm, tk), lambda j, i: (i, 0)),   # x (bf16)
            pl.BlockSpec((tn, tk), lambda j, i: (j, 0)),   # 2*centres (bf16)
            pl.BlockSpec((tm, 1), lambda j, i: (i, 0)),    # ||x||^2
            pl.BlockSpec((2, tn), lambda j, i: (0, j)),    # [||c||^2 ; isg]
        ]
        out_specs = pl.BlockSpec((tm, tn), lambda j, i: (i, j))
        kernel = _rbf_kernel_single
        scratch = []
        dims = ("parallel", "parallel")
    else:
        grid = (n_j, n_i, n_k)
        in_specs = [
            pl.BlockSpec((tm, tk), lambda j, i, k: (i, k)),
            pl.BlockSpec((tn, tk), lambda j, i, k: (j, k)),
            pl.BlockSpec((tm, 1), lambda j, i, k: (i, 0)),
            pl.BlockSpec((2, tn), lambda j, i, k: (0, j)),
        ]
        out_specs = pl.BlockSpec((tm, tn), lambda j, i, k: (i, j))
        kernel = _rbf_kernel_ksplit
        scratch = [pltpu.VMEM((tm, tn), jnp.float32)]
        dims = ("parallel", "parallel", "arbitrary")

    return pl.pallas_call(
        kernel,
        out_shape=jax.ShapeDtypeStruct((B, f_out), out_dtype),
        grid=grid,
        in_specs=in_specs,
        out_specs=out_specs,
        scratch_shapes=scratch,
        compiler_params=pltpu.CompilerParams(
            dimension_semantics=dims,
            vmem_limit_bytes=vmem_limit),
        cost_estimate=cost,
    )(x_mx, c2_mx, xsq, cs)


def rbf_reference(x, centres, log_sigmas):
    # Pure-JAX reference mirroring the PyTorch forward exactly (gaussian basis).
    diff = x[:, None, :] - centres[None, :, :]             # (B, F_out, F_in)
    dist = jnp.sqrt(jnp.sum(diff * diff, axis=-1))         # (B, F_out)
    dist = dist / jnp.exp(log_sigmas)[None, :]
    return jnp.exp(-(dist ** 2))


if __name__ == "__main__":
    B, IN_FEATURES, OUT_FEATURES = 32, 32, 128

    key = jax.random.PRNGKey(0)
    kx, kc = jax.random.split(key)

    x = jax.random.normal(kx, (B, IN_FEATURES), dtype=jnp.float32)
    # nn.init.normal_(centres, 0, 1)
    centres = jax.random.normal(kc, (OUT_FEATURES, IN_FEATURES), dtype=jnp.float32)
    # std chosen so distances/sigma ~ O(1) -> numerically meaningful outputs
    # (module supports a user-provided std; log_sigmas = log(std)).
    log_sigmas = jnp.full((OUT_FEATURES,),
                          0.5 * np.log(2.0 * IN_FEATURES), dtype=jnp.float32)

    ref = rbf_reference(x, centres, log_sigmas)

    # Main path (f32 output, bf16 MXU operands).
    out = jax.block_until_ready(rbf_forward(x, centres, log_sigmas))
    assert out.shape == (B, OUT_FEATURES) and out.dtype == jnp.float32
    assert jnp.allclose(out, ref, atol=2e-3, rtol=2e-2), "f32 path mismatch"

    # Exercise the F_in k-split (accumulator) path on the same small shapes.
    out_ks = jax.block_until_ready(
        rbf_forward(x, centres, log_sigmas, k_split_threshold=16))
    assert jnp.allclose(out_ks, ref, atol=2e-3, rtol=2e-2), "k-split mismatch"

    # bf16 epilogue / output variant (v6e/v7x store-bound regime).
    out_bf16 = jax.block_until_ready(
        rbf_forward(x, centres, log_sigmas, out_dtype=jnp.bfloat16))
    assert out_bf16.dtype == jnp.bfloat16
    assert jnp.allclose(out_bf16.astype(jnp.float32), ref,
                        atol=3e-2, rtol=1e-1), "bf16 path mismatch"

    print("KERNEL_OK")
</pallas_src>

<mosaic_0001>
module attributes {stable_mosaic.version = 11 : i64} {
  func.func @_rbf_kernel_single(%arg0: i32, %arg1: i32, %arg2: memref<16x32xbf16, #tpu.memory_space<vmem>>, %arg3: memref<128x32xbf16, #tpu.memory_space<vmem>>, %arg4: memref<16x1xf32, #tpu.memory_space<vmem>>, %arg5: memref<2x128xf32, #tpu.memory_space<vmem>>, %arg6: memref<16x128xf32, #tpu.memory_space<vmem>>) attributes {dimension_semantics = [#tpu.dimension_semantics<parallel>, #tpu.dimension_semantics<parallel>], iteration_bounds = array<i64: 1, 2>, scalar_prefetch = 0 : i64, scratch_operands = 0 : i64, tpu.core_type = #tpu.core_type<tc>, window_params = [{transform_indices = @transform_0, window_bounds = array<i64: 16, 32>}, {transform_indices = @transform_1, window_bounds = array<i64: 128, 32>}, {transform_indices = @transform_2, window_bounds = array<i64: 16, 1>}, {transform_indices = @transform_3, window_bounds = array<i64: 2, 128>}, {transform_indices = @transform_4, window_bounds = array<i64: 16, 128>}]} {
    %c0 = arith.constant 0 : index
    %c0_0 = arith.constant 0 : index
    %0 = vector.load %arg2[%c0, %c0_0] : memref<16x32xbf16, #tpu.memory_space<vmem>>, vector<16x32xbf16>
    %c0_1 = arith.constant 0 : index
    %c0_2 = arith.constant 0 : index
    %1 = vector.load %arg3[%c0_1, %c0_2] : memref<128x32xbf16, #tpu.memory_space<vmem>>, vector<128x32xbf16>
    %cst = arith.constant dense<0.000000e+00> : vector<16x128xf32>
    %2 = tpu.matmul %0, %1, %cst {dimension_numbers = #tpu.dot_dimension_numbers<[1], [1], [0], [0], [0, 0, 1, 0], [], []>} : vector<16x32xbf16>, vector<128x32xbf16>, vector<16x128xf32> -> vector<16x128xf32>
    %c0_3 = arith.constant 0 : index
    %c0_4 = arith.constant 0 : index
    %3 = vector.load %arg4[%c0_3, %c0_4] : memref<16x1xf32, #tpu.memory_space<vmem>>, vector<16x1xf32>
    %c0_5 = arith.constant 0 : index
    %c0_6 = arith.constant 0 : index
    %4 = vector.load %arg5[%c0_5, %c0_6] : memref<2x128xf32, #tpu.memory_space<vmem>>, vector<1x128xf32>
    %c1 = arith.constant 1 : index
    %c0_7 = arith.constant 0 : index
    %5 = vector.load %arg5[%c1, %c0_7] : memref<2x128xf32, #tpu.memory_space<vmem>>, vector<1x128xf32>
    %6 = vector.broadcast %3 : vector<16x1xf32> to vector<16x128xf32>
    %7 = vector.broadcast %4 : vector<1x128xf32> to vector<16x128xf32>
    %8 = arith.addf %6, %7 : vector<16x128xf32>
    %9 = arith.subf %8, %2 : vector<16x128xf32>
    %cst_8 = arith.constant 0.000000e+00 : f32
    %10 = vector.broadcast %cst_8 : f32 to vector<16x128xf32>
    %11 = arith.maximumf %9, %10 : vector<16x128xf32>
    %12 = vector.broadcast %5 : vector<1x128xf32> to vector<16x128xf32>
    %13 = arith.mulf %11, %12 : vector<16x128xf32>
    %cst_9 = arith.constant 0.000000e+00 : f32
    %14 = vector.broadcast %cst_9 : f32 to vector<16x128xf32>
    %15 = arith.subf %14, %13 : vector<16x128xf32>
    %16 = math.exp %15 : vector<16x128xf32>
    %c0_10 = arith.constant 0 : index
    %c0_11 = arith.constant 0 : index
    %17 = vector.load %arg6[%c0_10, %c0_11] : memref<16x128xf32, #tpu.memory_space<vmem>>, vector<16x128xf32>
    tpu.vector_store %arg6[%c0_10, %c0_11], %16 {strides = array<i32>} : memref<16x128xf32, #tpu.memory_space<vmem>>, vector<16x128xf32>,
    return
  }
  func.func @transform_0(%arg0: i32, %arg1: i32) -> (i32, i32) {
    %c0_i32 = arith.constant 0 : i32
    %c0_i32_0 = arith.constant 0 : i32
    return %arg1, %c0_i32 : i32, i32
  }
  func.func @transform_1(%arg0: i32, %arg1: i32) -> (i32, i32) {
    %c0_i32 = arith.constant 0 : i32
    %c0_i32_0 = arith.constant 0 : i32
    return %arg0, %c0_i32 : i32, i32
  }
  func.func @transform_2(%arg0: i32, %arg1: i32) -> (i32, i32) {
    %c0_i32 = arith.constant 0 : i32
    %c0_i32_0 = arith.constant 0 : i32
    return %arg1, %c0_i32 : i32, i32
  }
  func.func @transform_3(%arg0: i32, %arg1: i32) -> (i32, i32) {
    %c0_i32 = arith.constant 0 : i32
    %c0_i32_0 = arith.constant 0 : i32
    return %c0_i32, %arg0 : i32, i32
  }
  func.func @transform_4(%arg0: i32, %arg1: i32) -> (i32, i32) {
    %c0_i32 = arith.constant 0 : i32
    return %arg1, %arg0 : i32, i32
  }
}

</mosaic_0001>

<llo_original>
// kernel: tpu_custom_call.1
$region0: #{tpu_custom_call.1}
  #allocation0 [shape = 'u32[]', space=smem, size = 0x4, offset = 0x4, fixed_abs, tag = 'smem constant byte address 0x4 - core index']
  #allocation1 [shape = 'u32[72,128]{1,0:T(1,128)}', space=vmem, size = 0x9000, scoped, tag = 'internal scratch']
  %s0 = inlined_call_operand.vmem [shape: bf16[32,32], index: 0, kind: input, shape index: {}]
  %s1 = inlined_call_operand.vmem [shape: bf16[128,32], index: 1, kind: input, shape index: {}]
  %s2 = inlined_call_operand.vmem [shape: f32[32,1], index: 2, kind: input, shape index: {}]
  %s3 = inlined_call_operand.vmem [shape: f32[2,128], index: 3, kind: input, shape index: {}]
  %s4 = inlined_call_operand.hbm [shape: f32[32,128], index: 4, kind: output, shape index: {}]
  %s5 = sld [smem:[#allocation0]]
  $region49: #{tpu_custom_call.1} parent=0
    _
  %s7 = ssub.s32 1, %s5
  %s8 = scalar_select 0, %s7, %s5
  $region1: #{tpu_custom_call.1} parent=0
    #allocation2 [shape = 'u8[16384]{0}', space=vmem, size = 0x4000, scoped, tag = 'output window, operand 0']
    #allocation3 [shape = 's32[2]{0}', space=sflag, size = 0x8, scoped, tag = 'scoped memory for tpu_custom_call.1']
    %9 = vsyncpa [#allocation3], 0
    %s10 = scalar_lea.sflag [#allocation3], 1
    %11 = vsyncpa %s10, 0
    loop: start=0, step=1, limit=4
    $region2: #{tpu_custom_call.1} parent=1 // loop_pre_header
      _
    $region3: #{tpu_custom_call.1} parent=1 // loop_header
      %s13 = sphi 0, %s17
      %p14 = scmp.ge.s32.totalorder %s13, 4
      %s20 = sphi 0, %s32
      %s21 = sphi 0, %s28
      %s22 = sphi 0, %s20
      %s23 = sphi 0, %s21
      %s24 = sphi 0, %s22
      %s25 = sphi 0, %s23
      %s35 = sphi 0, %s37
      %s38 = sphi 0, %s35
      %s39 = sphi 0, %s38
      %s55 = sphi 0, %s39
      %s61 = sphi 0, %s63
      %s64 = sphi 0, %s61
      %s65 = sphi 0, %s64
      %s81 = sphi 0, %s65
      %s87 = sphi 0, %s89
      %s90 = sphi 0, %s87
      %s91 = sphi 0, %s90
      %s107 = sphi 0, %s91
      %s113 = sphi 0, %s115
      %s116 = sphi 0, %s113
      %s117 = sphi 0, %s116
      %s133 = sphi 0, %s117
      %s141 = sphi 0, %s143
      %s144 = sphi 0, %s141
      %s145 = sphi 0, %s144
      %s161 = sphi 0, %s145
    $region4: #{tpu_custom_call.1} parent=1 // loop_header_branch
      %16 = sbr.rel (%p14) target = $region8
    $region5: #{tpu_custom_call.1} parent=1 // loop_body
      %s18 = ssub.s32 %s13, 1
      %s19 = ssub.s32 %s13, 2
      %s26 = sadd.s32 1, %s21
      %p27 = scmp.ge.s32.totalorder %s26, 2
      %s28 = scalar_select %p27, 0, %s26
      %s29 = sadd.s32 1, %s20
      %s30 = scalar_select %p27, %s29, %s20
      %p31 = scmp.ge.s32.totalorder %s30, 1
      %s32 = scalar_select %p31, 0, %s30
      %s33 = ssub.s32 %s21, %s28
      %p34 = scmp.eq.s32.totalorder %s33, 0
      %s36 = sadd.s32 %s35, 1
      %s37 = scalar_select %p34, %s35, %s36
      %p40 = pneg %p34
      %p41 = scmp.eq.s32.totalorder %s13, 1
      %p42 = por %p40, %p41
      %p43 = scmp.ne.s32.totalorder %s35, %s38
      %p44 = scmp.eq.s32.totalorder %s13, 0
      %p45 = por %p43, %p44
      %p46 = scmp.ne.s32.totalorder %s35, %s38
      %p47 = scmp.eq.s32.totalorder %s18, 1
      %p48 = por %p46, %p47
      %p49 = scmp.ne.s32.totalorder %s38, %s39
      %p50 = scmp.eq.s32.totalorder %s18, 0
      %p51 = por %p49, %p50
      %p52 = scmp.ne.s32.totalorder %s38, %s39
      %p53 = scmp.eq.s32.totalorder %s19, 1
      %p54 = por %p52, %p53
      %p56 = scmp.ne.s32.totalorder %s39, %s55
      %p57 = scmp.eq.s32.totalorder %s19, 0
      %p58 = por %p56, %p57
      %s59 = ssub.s32 %s20, %s32
      %p60 = scmp.eq.s32.totalorder %s59, 0
      %s62 = sadd.s32 %s61, 1
      %s63 = scalar_select %p60, %s61, %s62
      %p66 = pneg %p60
      %p67 = scmp.eq.s32.totalorder %s13, 1
      %p68 = por %p66, %p67
      %p69 = scmp.ne.s32.totalorder %s61, %s64
      %p70 = scmp.eq.s32.totalorder %s13, 0
      %p71 = por %p69, %p70
      %p72 = scmp.ne.s32.totalorder %s61, %s64
      %p73 = scmp.eq.s32.totalorder %s18, 1
      %p74 = por %p72, %p73
      %p75 = scmp.ne.s32.totalorder %s64, %s65
      %p76 = scmp.eq.s32.totalorder %s18, 0
      %p77 = por %p75, %p76
      %p78 = scmp.ne.s32.totalorder %s64, %s65
      %p79 = scmp.eq.s32.totalorder %s19, 1
      %p80 = por %p78, %p79
      %p82 = scmp.ne.s32.totalorder %s65, %s81
      %p83 = scmp.eq.s32.totalorder %s19, 0
      %p84 = por %p82, %p83
      %s85 = ssub.s32 %s21, %s28
      %p86 = scmp.eq.s32.totalorder %s85, 0
      %s88 = sadd.s32 %s87, 1
      %s89 = scalar_select %p86, %s87, %s88
      %p92 = pneg %p86
      %p93 = scmp.eq.s32.totalorder %s13, 1
      %p94 = por %p92, %p93
      %p95 = scmp.ne.s32.totalorder %s87, %s90
      %p96 = scmp.eq.s32.totalorder %s13, 0
      %p97 = por %p95, %p96
      %p98 = scmp.ne.s32.totalorder %s87, %s90
      %p99 = scmp.eq.s32.totalorder %s18, 1
      %p100 = por %p98, %p99
      %p101 = scmp.ne.s32.totalorder %s90, %s91
      %p102 = scmp.eq.s32.totalorder %s18, 0
      %p103 = por %p101, %p102
      %p104 = scmp.ne.s32.totalorder %s90, %s91
      %p105 = scmp.eq.s32.totalorder %s19, 1
      %p106 = por %p104, %p105
      %p108 = scmp.ne.s32.totalorder %s91, %s107
      %p109 = scmp.eq.s32.totalorder %s19, 0
      %p110 = por %p108, %p109
      %s111 = ssub.s32 %s20, %s32
      %p112 = scmp.eq.s32.totalorder %s111, 0
      %s114 = sadd.s32 %s113, 1
      %s115 = scalar_select %p112, %s113, %s114
      %p118 = pneg %p112
      %p119 = scmp.eq.s32.totalorder %s13, 1
      %p120 = por %p118, %p119
      %p121 = scmp.ne.s32.totalorder %s113, %s116
      %p122 = scmp.eq.s32.totalorder %s13, 0
      %p123 = por %p121, %p122
      %p124 = scmp.ne.s32.totalorder %s113, %s116
      %p125 = scmp.eq.s32.totalorder %s18, 1
      %p126 = por %p124, %p125
      %p127 = scmp.ne.s32.totalorder %s116, %s117
      %p128 = scmp.eq.s32.totalorder %s18, 0
      %p129 = por %p127, %p128
      %p130 = scmp.ne.s32.totalorder %s116, %s117
      %p131 = scmp.eq.s32.totalorder %s19, 1
      %p132 = por %p130, %p131
      %p134 = scmp.ne.s32.totalorder %s117, %s133
      %p135 = scmp.eq.s32.totalorder %s19, 0
      %p136 = por %p134, %p135
      %s137 = ssub.s32 %s21, %s28
      %s138 = ssub.s32 %s20, %s32
      %s139 = sor.u32 %s137, %s138
      %p140 = scmp.eq.s32.totalorder %s139, 0
      %s142 = sadd.s32 %s141, 1
      %s143 = scalar_select %p140, %s141, %s142
      %p146 = pneg %p140
      %p147 = scmp.eq.s32.totalorder %s13, 1
      %p148 = por %p146, %p147
      %p149 = scmp.ne.s32.totalorder %s141, %s144
      %p150 = scmp.eq.s32.totalorder %s13, 0
      %p151 = por %p149, %p150
      %p152 = scmp.ne.s32.totalorder %s141, %s144
      %p153 = scmp.eq.s32.totalorder %s18, 1
      %p154 = por %p152, %p153
      %p155 = scmp.ne.s32.totalorder %s144, %s145
      %p156 = scmp.eq.s32.totalorder %s18, 0
      %p157 = por %p155, %p156
      %p158 = scmp.ne.s32.totalorder %s144, %s145
      %p159 = scmp.eq.s32.totalorder %s19, 1
      %p160 = por %p158, %p159
      %p162 = scmp.ne.s32.totalorder %s145, %s161
      %p163 = scmp.eq.s32.totalorder %s19, 0
      %p164 = por %p162, %p163
      %p165 = scmp.le.s32.totalorder 1, %s13
      %p166 = scmp.lt.s32.totalorder %s13, 3
      %p167 = pnand %p165, %p166
      %p168 = pneg %p167
      // Predicated region
      $region9: #{tpu_custom_call.1} parent=5 // pred_check
        _
      $region10: #{tpu_custom_call.1} parent=5 // pred_check_branch
        %170 = sbr.rel (%p167) target = $region12
      $region11: #{tpu_custom_call.1} parent=5 // pred_region
        %s171 = ssub.s32 %s13, 1
        // Predicated region
        $region13: #{tpu_custom_call.1} parent=11 // pred_check
          %p172 = pneg %p77
        $region14: #{tpu_custom_call.1} parent=11 // pred_check_branch
          %174 = sbr.rel (%p172) target = $region16
        $region15: #{tpu_custom_call.1} parent=11 // pred_region
          %s175 = smul.u32 16, %s22
          %p176 = scmp.lt.s32.totalorder %s175, 15
          %s177 = scalar_select %p176, %s175, 15
          %s178 = smul.addr %s177, 4
          %s179 = scalar_lea.vmem %s1, %s178
          %s180 = smul.u32 16, %s22
        $region16: #{tpu_custom_call.1} parent=11 // pred_fallthru
          _
        // Predicated region
        $region17: #{tpu_custom_call.1} parent=11 // pred_check
          %p181 = pneg %p129
        $region18: #{tpu_custom_call.1} parent=11 // pred_check_branch
          %183 = sbr.rel (%p181) target = $region20
        $region19: #{tpu_custom_call.1} parent=11 // pred_region
          %p184 = scmp.lt.s32.totalorder %s22, 0
          %s185 = scalar_select %p184, %s22, 0
          %s186 = smul.addr %s185, 2
          %s187 = scalar_lea.vmem %s3, %s186
        $region20: #{tpu_custom_call.1} parent=11 // pred_fallthru
          _
      $region12: #{tpu_custom_call.1} parent=5 // pred_fallthru
        _
      %p188 = scmp.lt.s32.totalorder %s13, 2
      // Predicated region
      $region21: #{tpu_custom_call.1} parent=5 // pred_check
        %p189 = pneg %p188
      $region22: #{tpu_custom_call.1} parent=5 // pred_check_branch
        %191 = sbr.rel (%p189) target = $region24
      $region23: #{tpu_custom_call.1} parent=5 // pred_region
        // Predicated region
        $region25: #{tpu_custom_call.1} parent=23 // pred_check
          %p192 = pneg %p45
        $region26: #{tpu_custom_call.1} parent=23 // pred_check_branch
          %194 = sbr.rel (%p192) target = $region28
        $region27: #{tpu_custom_call.1} parent=23 // pred_region
          %s195 = smul.u32 2, %s21
          %p196 = scmp.lt.s32.totalorder %s195, 3
          %s197 = scalar_select %p196, %s195, 3
          %s198 = smul.addr %s197, 4
          %s199 = scalar_lea.vmem %s0, %s198
          %s200 = smul.u32 2, %s21
        $region28: #{tpu_custom_call.1} parent=23 // pred_fallthru
          _
        // Predicated region
        $region29: #{tpu_custom_call.1} parent=23 // pred_check
          %p201 = pneg %p97
        $region30: #{tpu_custom_call.1} parent=23 // pred_check_branch
          %203 = sbr.rel (%p201) target = $region32
        $region31: #{tpu_custom_call.1} parent=23 // pred_region
          %s204 = smul.u32 2, %s21
          %p205 = scmp.lt.s32.totalorder %s204, 3
          %s206 = scalar_select %p205, %s204, 3
          %s207 = smul.addr %s206, 8
          %s208 = scalar_lea.vmem %s2, %s207
          %s209 = smul.u32 2, %s21
        $region32: #{tpu_custom_call.1} parent=23 // pred_fallthru
          _
      $region24: #{tpu_custom_call.1} parent=5 // pred_fallthru
        _
      %p210 = scmp.le.s32.totalorder 1, %s13
      %p211 = scmp.lt.s32.totalorder %s13, 3
      %p212 = pnand %p210, %p211
      %p213 = pneg %p212
      // Predicated region
      $region33: #{tpu_custom_call.1} parent=5 // pred_check
        _
      $region34: #{tpu_custom_call.1} parent=5 // pred_check_branch
        %215 = sbr.rel (%p212) target = $region36
      $region35: #{tpu_custom_call.1} parent=5 // pred_region
        %s216 = ssub.s32 %s13, 1
        %s217 = smul.u32 2, %s23
        %p218 = scmp.lt.s32.totalorder %s217, 3
        %s219 = scalar_select %p218, %s217, 3
        %s220 = smul.addr %s219, 4
        %s221 = scalar_lea.vmem %s0, %s220
        %p222 = pneg %p51
        %p223 = pneg %p48
        %s224 = smul.u32 16, %s22
        %p225 = scmp.lt.s32.totalorder %s224, 15
        %s226 = scalar_select %p225, %s224, 15
        %s227 = smul.addr %s226, 4
        %s228 = scalar_lea.vmem %s1, %s227
        %p229 = pneg %p77
        %p230 = pneg %p74
        %s231 = smul.u32 2, %s23
        %p232 = scmp.lt.s32.totalorder %s231, 3
        %s233 = scalar_select %p232, %s231, 3
        %s234 = smul.addr %s233, 8
        %s235 = scalar_lea.vmem %s2, %s234
        %p236 = pneg %p103
        %p237 = pneg %p100
        %p238 = scmp.lt.s32.totalorder %s22, 0
        %s239 = scalar_select %p238, %s22, 0
        %s240 = smul.addr %s239, 2
        %s241 = scalar_lea.vmem %s3, %s240
        %p242 = pneg %p129
        %p243 = pneg %p126
        %p244 = pneg %p157
        %p245 = pneg %p154
        %s246 = sand.u32 %s144, 1
        %s247 = scalar_lea.sflag [#allocation3], %s246
        %s248 = sand.u32 %s144, 1
        %s249 = smul.addr %s248, 16
        %s250 = scalar_lea.vmem [#allocation2], %s249
        %s251 = smul.u32 2, %s23
        %p252 = scmp.lt.s32.totalorder %s251, 3
        %s253 = scalar_select %p252, %s251, 3
        %s254 = smul.addr %s253, 4
        %s255 = scalar_lea.vmem %s0, %s254
        %s256 = smul.u32 2, %s23
        %s257 = smul.u32 16, %s22
        %p258 = scmp.lt.s32.totalorder %s257, 15
        %s259 = scalar_select %p258, %s257, 15
        %s260 = smul.addr %s259, 4
        %s261 = scalar_lea.vmem %s1, %s260
        %s262 = smul.u32 16, %s22
        %s263 = smul.u32 2, %s23
        %p264 = scmp.lt.s32.totalorder %s263, 3
        %s265 = scalar_select %p264, %s263, 3
        %s266 = smul.addr %s265, 8
        %s267 = scalar_lea.vmem %s2, %s266
        %s268 = smul.u32 2, %s23
        %p269 = scmp.lt.s32.totalorder %s22, 0
        %s270 = scalar_select %p269, %s22, 0
        %s271 = smul.addr %s270, 2
        %s272 = scalar_lea.vmem %s3, %s271
        %s273 = smul.u32 2, %s23
        %v274 = vld [vmem:[%s255] sm:$0xf]
        %v275 = vld [vmem:[%s255 + $0x4] sm:$0xf]
        %v276 = vld [vmem:[%s261] sm:$0xf]
        %v277 = vld [vmem:[%s261 + $0x4] sm:$0xf]
        %v278 = vld [vmem:[%s261 + $0x8] sm:$0xf]
        %v279 = vld [vmem:[%s261 + $0xc] sm:$0xf]
        %v280 = vld [vmem:[%s261 + $0x10] sm:$0xf]
        %v281 = vld [vmem:[%s261 + $0x14] sm:$0xf]
        %v282 = vld [vmem:[%s261 + $0x18] sm:$0xf]
        %v283 = vld [vmem:[%s261 + $0x1c] sm:$0xf]
        %v284 = vld [vmem:[%s261 + $0x20] sm:$0xf]
        %v285 = vld [vmem:[%s261 + $0x24] sm:$0xf]
        %v286 = vld [vmem:[%s261 + $0x28] sm:$0xf]
        %v287 = vld [vmem:[%s261 + $0x2c] sm:$0xf]
        %v288 = vld [vmem:[%s261 + $0x30] sm:$0xf]
        %v289 = vld [vmem:[%s261 + $0x34] sm:$0xf]
        %v290 = vld [vmem:[%s261 + $0x38] sm:$0xf]
        %v291 = vld [vmem:[%s261 + $0x3c] sm:$0xf]
        %v294 = vunpack.c.l.b16 %v274
        %v295 = vunpack.c.l.b16 %v275
        %v296 = vpack.c.b16 %v295, %v294
        %v313 = vunpack.c.l.b16 %v276
        %v314 = vunpack.c.l.b16 %v277
        %v315 = vunpack.c.l.b16 %v278
        %v316 = vunpack.c.l.b16 %v279
        %v317 = vunpack.c.l.b16 %v280
        %v318 = vunpack.c.l.b16 %v281
        %v319 = vunpack.c.l.b16 %v282
        %v320 = vunpack.c.l.b16 %v283
        %v321 = vunpack.c.l.b16 %v284
        %v322 = vunpack.c.l.b16 %v285
        %v323 = vunpack.c.l.b16 %v286
        %v324 = vunpack.c.l.b16 %v287
        %v325 = vunpack.c.l.b16 %v288
        %v326 = vunpack.c.l.b16 %v289
        %v327 = vunpack.c.l.b16 %v290
        %v328 = vunpack.c.l.b16 %v291
        %v329 = vpack.c.b16 %v314, %v313
        %v330 = vpack.c.b16 %v316, %v315
        %v331 = vpack.c.b16 %v318, %v317
        %v332 = vpack.c.b16 %v320, %v319
        %v333 = vpack.c.b16 %v322, %v321
        %v334 = vpack.c.b16 %v324, %v323
        %v335 = vpack.c.b16 %v326, %v325
        %v336 = vpack.c.b16 %v328, %v327
        %vm337 = vcmask 261120
        %v339 = vsel %vm337, %v296, 0
        %v342 = vsel %vm337, %v329, 0
        %v345 = vsel %vm337, %v330, 0
        %v348 = vsel %vm337, %v331, 0
        %v351 = vsel %vm337, %v332, 0
        %v354 = vsel %vm337, %v333, 0
        %v357 = vsel %vm337, %v334, 0
        %v360 = vsel %vm337, %v335, 0
        %v363 = vsel %vm337, %v336, 0
        %365 = vmatpush.bf16.xpose.msra.mxu0 %v363
        %366 = vmatpush.bf16.xpose.msra.mxu0 %v360
        %367 = vmatpush.bf16.xpose.msra.mxu0 %v357
        %368 = vmatpush.bf16.xpose.msra.mxu0 %v354
        %369 = vmatpush.bf16.xpose.msra.mxu0 %v351
        %370 = vmatpush.bf16.xpose.msra.mxu0 %v348
        %371 = vmatpush.bf16.xpose.msra.mxu0 %v345
        %372 = vmatpush.bf16.xpose.msra.mxu0 %v342
        %373 = vmatmul.bf16.gmra.mxu0 %v339
        %v374 = vpop.f32.mrf.mxu0
        %v375 = vadd.f32 0.0, %v374
        %v376 = vpop.f32.mrf.mxu0
        %v377 = vadd.f32 0.0, %v376
        %378 = vdwg.mxu0
        %v379 = vld [vmem:[%s267] sm:$0xff]
        %v380 = vld [vmem:[%s267 + $0x8] sm:$0xff]
        %v381 = vld [vmem:[%s272] sm:$0x1]
        %v382 = vld [vmem:[%s272 + $0x1] sm:$0x1]
        %384 = vset.pattern.permute.xlu0 0
        %385 = vperm.xlu0 %384, %v379
        %v386 = vpop.permute.xlu0 %385
        %389 = vset.pattern.permute.xlu0 0
        %390 = vperm.xlu0 %389, %v380
        %v391 = vpop.permute.xlu0 %390
        %v393 = vperm.slane %v381, 0
        %v394 = vadd.f32 %v386, %v393
        %v395 = vadd.f32 %v391, %v393
        %v396 = vsub.f32 %v394, %v375
        %v397 = vsub.f32 %v395, %v377
        %v398 = vmax.f32 %v396, 0.0
        %v399 = vmax.f32 %v397, 0.0
        %v400 = vperm.slane %v382, 0
        %v401 = vmul.f32 %v398, %v400
        %v402 = vmul.f32 %v399, %v400
        %v403 = vsub.f32 0.0, %v401
        %v404 = vsub.f32 0.0, %v402
        %v405 = vmul.f32 %v403, 1.442695
        %v406 = vpow.pop %v405
        %v407 = vmul.f32 %v404, 1.442695
        %v408 = vpow.pop %v407
        %409 = vst [vmem:[%s250] sm:$0xff] %v406
        %410 = vst [vmem:[%s250 + $0x8] sm:$0xff] %v408
        %s411 = sand.u32 %s144, 1
        %s412 = scalar_lea.sflag [#allocation3], %s411
        %s413 = sand.u32 %s144, 1
        %s414 = smul.addr %s413, 16
        %s415 = scalar_lea.vmem [#allocation2], %s414
        // Predicated region
        $region37: #{tpu_custom_call.1} parent=35 // pred_check
          %p416 = pneg %p154
        $region38: #{tpu_custom_call.1} parent=35 // pred_check_branch
          %418 = sbr.rel (%p416) target = $region40
        $region39: #{tpu_custom_call.1} parent=35 // pred_region
          %s419 = smul.u32 2, %s23
          %421 = vsyncadd %s412, 0
          %s422 = sadd.s32 %s22, %s419
          %s423 = smul.addr %s422, 8
          %s424 = scalar_lea.hbm %s4, %s423
          %s425 = sshll.u32 %s415, 4
          %s426 = int_to_ptr.vmem [resolvable:$true] %s425
          %s427 = sshll.u32 %s424, 4
          %s428 = int_to_ptr.hbm [resolvable:$true] %s427
          %433 = dma.vmem_to_hbm [thread:$0]  %s426, 256, %s428, %s412, 128, 128, 8
        $region40: #{tpu_custom_call.1} parent=35 // pred_fallthru
          _
      $region36: #{tpu_custom_call.1} parent=5 // pred_fallthru
        _
      %p434 = scmp.le.s32.totalorder 2, %s13
      // Predicated region
      $region41: #{tpu_custom_call.1} parent=5 // pred_check
        %p435 = pneg %p434
      $region42: #{tpu_custom_call.1} parent=5 // pred_check_branch
        %437 = sbr.rel (%p435) target = $region44
      $region43: #{tpu_custom_call.1} parent=5 // pred_region
        %s438 = ssub.s32 %s13, 2
        // Predicated region
        $region45: #{tpu_custom_call.1} parent=43 // pred_check
          %p439 = pneg %p160
        $region46: #{tpu_custom_call.1} parent=43 // pred_check_branch
          %441 = sbr.rel (%p439) target = $region48
        $region47: #{tpu_custom_call.1} parent=43 // pred_region
          %s442 = sand.u32 %s145, 1
          %s443 = scalar_lea.sflag [#allocation3], %s442
          %s444 = sand.u32 %s145, 1
          %s445 = smul.addr %s444, 16
          %s446 = scalar_lea.vmem [#allocation2], %s445
          %448 = dma.done %s443, 256
        $region48: #{tpu_custom_call.1} parent=43 // pred_fallthru
          _
      $region44: #{tpu_custom_call.1} parent=5 // pred_fallthru
        _
    $region6: #{tpu_custom_call.1} parent=1 // loop_footer
      %s17 = sadd.s32 1, %s13
    $region7: #{tpu_custom_call.1} parent=1 // loop_footer_branch
      %12 = sbr.rel target = $region3
    $region8: #{tpu_custom_call.1} parent=1 // loop_exit
      _
    %449 = vsyncpa [#allocation3], 1
    %s450 = scalar_lea.sflag [#allocation3], 1
    %451 = vsyncpa %s450, 1

</llo_original>
